<compile_context>
chip_gen: v6e
topology: v6e:2x2x1
jax: 0.10.0
libtpu: 0.0.40
codegen_flags: <defaults>
</compile_context>

<pallas_src>
import math

import jax
import jax.numpy as jnp
from jax.experimental import pallas as pl
from jax.experimental.pallas import tpu as pltpu


LANE = 128          # vreg lane width (last-dim tiling unit)
_SUBLANE_PAD = 32   # covers f32(8) / bf16(16) / int8-fp8(32) sublane packing


def _round_up(v, m):
    return -(-v // m) * m


# ----------------------------- Pallas kernel --------------------------------
def _pe_add_kernel(x_ref, pe_ref, mag_ref, o_ref):
    """o = x + pe * magnitude on one (1, TS, F) tile.

    Scale + cast happen in-kernel (free VALU/EUP slack on an HBM-bound kernel).
    One lane-dense store per tile; no masking, no in-kernel slicing.
    """
    pe = pe_ref[...].astype(jnp.float32)              # (TS, F)
    add = (pe * mag_ref[...]).astype(o_ref.dtype)     # mag (1, F) broadcasts
    o_ref[...] = x_ref[...] + add                     # x (1, TS, F)


def _choose_seq_tile(seq_len, row_bytes, target_block_bytes=2 << 20):
    """Pick a sequence-tile size so one block is ~<= 2 MiB.

    Keeps double-buffered x-in + x-out + pe blocks (~6x block) far below v7x's
    scoped 32 MiB / 64 MiB physical VMEM while keeping per-grid-step overhead
    (~0.35 us) amortized.  Result is always a multiple of 32 sublanes.
    """
    ts = max(1, target_block_bytes // max(1, row_bytes))
    if ts >= seq_len:
        return _round_up(seq_len, _SUBLANE_PAD)
    return max(_SUBLANE_PAD, (ts // _SUBLANE_PAD) * _SUBLANE_PAD)


# ------------------------------ JAX wrapper ----------------------------------
class PositionalEncodingPallas:
    """JAX/Pallas port of PositionalEncoding (default 'scalable_sinusoidal', drop_out=0)."""

    def __init__(self, d_pos, max_seq_length, type='scalable_sinusoidal',
                 init_magnitude=1.0, d_start_idx=0, drop_out=0.0, rng_key=None):
        if type is None:
            type = 'none'
        if type == 'learnable':
            key = rng_key if rng_key is not None else jax.random.PRNGKey(0)
            self.pe = jax.random.normal(key, (max_seq_length, d_pos),
                                        dtype=jnp.float32) * init_magnitude
            self.magnitude = jnp.ones((1, d_pos), jnp.float32)   # identity scale
        elif type in ('sinusoidal', 'scalable_sinusoidal'):
            position = jnp.arange(0, max_seq_length, dtype=jnp.float32)[:, None]
            div_term = jnp.exp(jnp.arange(0, d_pos, 2, dtype=jnp.float32)
                               * (-math.log(10000.0) / d_pos))
            pe = jnp.zeros((max_seq_length, d_pos), dtype=jnp.float32)
            pe = pe.at[:, 0::2].set(jnp.sin(position * div_term))
            pe = pe.at[:, 1::2].set(jnp.cos(position * div_term))
            self.pe = pe
            if type == 'scalable_sinusoidal':
                self.magnitude = jnp.ones((1, d_pos), jnp.float32) * init_magnitude
            else:
                self.magnitude = jnp.ones((1, d_pos), jnp.float32)
        elif type == 'none':
            self.pe = jnp.zeros((max_seq_length, d_pos), jnp.float32)
            self.magnitude = jnp.ones((1, d_pos), jnp.float32)
        else:
            raise ValueError(f"unknown positional-encoding type: {type}")

        self.d_pos = d_pos
        self.max_seq_length = max_seq_length
        self.d_start_idx = d_start_idx
        self.d_end_idx = d_start_idx + d_pos
        assert self.d_start_idx >= 0
        # TODO(synk): drop_out > 0.0 (nn.Dropout) not implemented; default path is Identity.

        self._pe_cache = {}    # (dtype, D)            -> (pe_padded, mag_padded)
        self._fn_cache = {}    # (shape, dtype, donate) -> cached jitted callable

    # ---------------- geometry of the touched feature window -----------------
    def _plan(self, D):
        d0, d1, dp = self.d_start_idx, self.d_end_idx, self.d_pos
        if dp % LANE == 0 and d0 % LANE == 0:
            # Lane-aligned slice-only fast path (includes lane- but not
            # block-aligned configs): tile the touched window into
            # gcd(d_pos, d_start)-wide feature blocks; untouched channels never
            # move HBM<->VMEM (aliased output).
            fb = math.gcd(dp, d0) if d0 else dp
            return dict(feat_block=fb, n_feat=dp // fb, x_feat_off=d0 // fb,
                        pe_w=dp, pe_col_off=0)
        win_lo = d0 // LANE
        win_hi = -(-d1 // LANE)
        if win_hi * LANE <= D:
            # Unaligned slice: move only the lane-aligned 128-wide window that
            # covers it; pe/magnitude zero-padded to that window width.
            return dict(feat_block=LANE, n_feat=win_hi - win_lo, x_feat_off=win_lo,
                        pe_w=(win_hi - win_lo) * LANE, pe_col_off=d0 - win_lo * LANE)
        # Window would spill past D (narrow feature dim) -> full-width blocks.
        return dict(feat_block=D, n_feat=1, x_feat_off=0, pe_w=D, pe_col_off=d0)

    # ------------- cached (padded) pe / magnitude buffers per dtype ----------
    def _pe_mag(self, dtype, D):
        key = (jnp.dtype(dtype), int(D))
        hit = self._pe_cache.get(key)
        if hit is not None:
            return hit
        g = self._plan(D)
        pe = self.pe.astype(dtype)                      # (max_L, d_pos) in x.dtype
        mag = self.magnitude.astype(jnp.float32)        # (1, d_pos) f32
        if g['pe_w'] != self.d_pos or g['pe_col_off'] != 0:
            lo = g['pe_col_off']
            hi = lo + self.d_pos
            pe = (jnp.zeros((self.max_seq_length, g['pe_w']), dtype)
                  .at[:, lo:hi].set(pe))
            mag = (jnp.zeros((1, g['pe_w']), jnp.float32)
                   .at[:, lo:hi].set(mag))
        hit = (pe, mag)
        self._pe_cache[key] = hit
        return hit

    # ---------------- cached pallas_call (+jit/donate) per shape -------------
    def _get_fn(self, shape, dtype, donate):
        key = (tuple(shape), jnp.dtype(dtype), bool(donate))
        fn = self._fn_cache.get(key)
        if fn is not None:
            return fn

        B, S, D = shape
        g = self._plan(D)
        fb, n_feat, x_off = g['feat_block'], g['n_feat'], g['x_feat_off']
        itemsize = jnp.dtype(dtype).itemsize
        ts = _choose_seq_tile(S, fb * itemsize)
        n_seq = pl.cdiv(S, ts)

        # Grid order (seq, feat, batch): batch innermost so pe / magnitude block
        # indices are unchanged across consecutive steps and Pallas skips their
        # re-DMA (pe fetched once per (s, f), not once per batch element).
        grid = (n_seq, n_feat, B)
        x_spec = pl.BlockSpec((1, ts, fb), lambda s, f, b: (b, s, x_off + f))
        pe_spec = pl.BlockSpec((ts, fb), lambda s, f, b: (s, f))
        mag_spec = pl.BlockSpec((1, fb), lambda s, f, b: (0, f))

        bytes_moved = itemsize * (2 * B * S + S) * (n_feat * fb) + 4 * n_feat * fb
        call = pl.pallas_call(
            _pe_add_kernel,
            out_shape=jax.ShapeDtypeStruct((B, S, D), dtype),
            grid=grid,
            in_specs=[x_spec, pe_spec, mag_spec],
            out_specs=x_spec,
            # In-place update of x: output blocks cover only the touched feature
            # window; aliasing keeps every untouched channel without any DMA.
            # NOTE: correctness of the untouched channels depends on this alias.
            input_output_aliases={0: 0},
            compiler_params=pltpu.CompilerParams(
                dimension_semantics=("parallel", "parallel", "parallel"),
                vmem_limit_bytes=32 * 1024 * 1024,
            ),
            cost_estimate=pl.CostEstimate(
                flops=int(2 * B * S * self.d_pos),
                transcendentals=0,
                bytes_accessed=int(bytes_moved),
            ),
        )

        def fn(x, pe, mag):
            return call(x, pe, mag)

        fn = jax.jit(fn, donate_argnums=(0,)) if donate else jax.jit(fn)
        self._fn_cache[key] = fn
        return fn

    def __call__(self, x, seq_dim=1, donate_input=True):
        # layout: x = (B, S, D_total); seq_dim must be 1, feature dim last.
        assert seq_dim == 1, "this kernel assumes layout (batch, seq, feature)"
        assert x.ndim == 3
        B, S, D = x.shape
        assert S <= self.max_seq_length
        assert self.d_end_idx <= D
        # NOTE: with donate_input=True, x is consumed (matches PyTorch in-place).
        pe, mag = self._pe_mag(x.dtype, D)
        fn = self._get_fn(x.shape, x.dtype, donate_input)
        return fn(x, pe, mag)


# --------------------------------- main --------------------------------------
if __name__ == "__main__":
    key = jax.random.PRNGKey(0)
    ks = jax.random.split(key, 4)

    def run_case(k, B, S, D, d_pos, d_start, max_L, mag):
        x = jax.random.normal(k, (B, S, D), dtype=jnp.float32)
        mod = PositionalEncodingPallas(d_pos=d_pos, max_seq_length=max_L,
                                       init_magnitude=mag, d_start_idx=d_start)
        pe_ref = (mod.pe[:S] * mod.magnitude).astype(x.dtype)
        ref = x.at[:, :, d_start:d_start + d_pos].add(pe_ref[None])
        out = jax.block_until_ready(mod(x, seq_dim=1))   # x donated / consumed
        assert out.shape == (B, S, D)
        assert jnp.allclose(out, ref, atol=1e-6, rtol=1e-6), \
            (B, S, D, d_pos, d_start)

    # 1) block-aligned fast path (single feature block, slice-only + aliased)
    run_case(ks[0], B=2, S=16, D=256, d_pos=128, d_start=128, max_L=32, mag=1.5)
    # 2) lane-aligned but not block-aligned (feature grid axis: 2 x 128 blocks)
    run_case(ks[1], B=2, S=16, D=512, d_pos=256, d_start=128, max_L=32, mag=0.9)
    # 3) unaligned narrow slice inside wide D (lane-aligned window path)
    run_case(ks[2], B=2, S=16, D=256, d_pos=16, d_start=8, max_L=32, mag=0.7)
    # 4) unaligned slice with small D (full-width fallback path)
    run_case(ks[3], B=2, S=8, D=32, d_pos=16, d_start=8, max_L=16, mag=1.1)

    print("KERNEL_OK")
</pallas_src>

<mosaic_0001>
module attributes {stable_mosaic.version = 11 : i64} {
  func.func @_pe_add_kernel(%arg0: i32, %arg1: i32, %arg2: i32, %arg3: memref<1x32x128xf32, #tpu.memory_space<vmem>>, %arg4: memref<32x128xf32, #tpu.memory_space<vmem>>, %arg5: memref<1x128xf32, #tpu.memory_space<vmem>>, %arg6: memref<1x32x128xf32, #tpu.memory_space<vmem>>) attributes {dimension_semantics = [#tpu.dimension_semantics<parallel>, #tpu.dimension_semantics<parallel>, #tpu.dimension_semantics<parallel>], iteration_bounds = array<i64: 1, 1, 2>, scalar_prefetch = 0 : i64, scratch_operands = 0 : i64, tpu.core_type = #tpu.core_type<tc>, window_params = [{transform_indices = @transform_0, window_bounds = array<i64: 1, 32, 128>}, {transform_indices = @transform_1, window_bounds = array<i64: 32, 128>}, {transform_indices = @transform_2, window_bounds = array<i64: 1, 128>}, {transform_indices = @transform_3, window_bounds = array<i64: 1, 32, 128>}]} {
    %c0 = arith.constant 0 : index
    %c0_0 = arith.constant 0 : index
    %0 = vector.load %arg4[%c0, %c0_0] : memref<32x128xf32, #tpu.memory_space<vmem>>, vector<32x128xf32>
    %c0_1 = arith.constant 0 : index
    %c0_2 = arith.constant 0 : index
    %1 = vector.load %arg5[%c0_1, %c0_2] : memref<1x128xf32, #tpu.memory_space<vmem>>, vector<1x128xf32>
    %2 = vector.broadcast %1 : vector<1x128xf32> to vector<32x128xf32>
    %3 = arith.mulf %0, %2 : vector<32x128xf32>
    %c0_3 = arith.constant 0 : index
    %c0_4 = arith.constant 0 : index
    %c0_5 = arith.constant 0 : index
    %4 = vector.load %arg3[%c0_3, %c0_4, %c0_5] : memref<1x32x128xf32, #tpu.memory_space<vmem>>, vector<1x32x128xf32>
    %5 = vector.shape_cast %3 : vector<32x128xf32> to vector<1x32x128xf32>
    %6 = arith.addf %4, %5 : vector<1x32x128xf32>
    %c0_6 = arith.constant 0 : index
    %c0_7 = arith.constant 0 : index
    %c0_8 = arith.constant 0 : index
    %7 = vector.load %arg6[%c0_6, %c0_7, %c0_8] : memref<1x32x128xf32, #tpu.memory_space<vmem>>, vector<1x32x128xf32>
    tpu.vector_store %arg6[%c0_6, %c0_7, %c0_8], %6 {strides = array<i32>} : memref<1x32x128xf32, #tpu.memory_space<vmem>>, vector<1x32x128xf32>,
    return
  }
  func.func @transform_0(%arg0: i32, %arg1: i32, %arg2: i32) -> (i32, i32, i32) {
    %c1_i32 = arith.constant 1 : i32
    %0 = arith.addi %c1_i32, %arg1 : i32
    %c0_i32 = arith.constant 0 : i32
    return %arg2, %arg0, %0 : i32, i32, i32
  }
  func.func @transform_1(%arg0: i32, %arg1: i32, %arg2: i32) -> (i32, i32) {
    %c0_i32 = arith.constant 0 : i32
    return %arg0, %arg1 : i32, i32
  }
  func.func @transform_2(%arg0: i32, %arg1: i32, %arg2: i32) -> (i32, i32) {
    %c0_i32 = arith.constant 0 : i32
    %c0_i32_0 = arith.constant 0 : i32
    return %c0_i32, %arg1 : i32, i32
  }
  func.func @transform_3(%arg0: i32, %arg1: i32, %arg2: i32) -> (i32, i32, i32) {
    %c1_i32 = arith.constant 1 : i32
    %0 = arith.addi %c1_i32, %arg1 : i32
    %c0_i32 = arith.constant 0 : i32
    return %arg2, %arg0, %0 : i32, i32, i32
  }
}

</mosaic_0001>

<llo_original>
// kernel: fn.1
$region0: #{fn.1}
  #allocation0 [shape = 'u32[]', space=smem, size = 0x4, offset = 0x4, fixed_abs, tag = 'smem constant byte address 0x4 - core index']
  #allocation1 [shape = 'u32[144,128]{1,0:T(1,128)}', space=vmem, size = 0x12000, scoped, tag = 'internal scratch']
  %s0 = inlined_call_operand.hbm [shape: f32[2,16,256], index: 0, kind: input, shape index: {}, may-alias: {0,3}]
  %s1 = inlined_call_operand.hbm [shape: f32[32,128], index: 1, kind: input, shape index: {}]
  %s2 = inlined_call_operand.vmem [shape: f32[1,128], index: 2, kind: input, shape index: {}]
  %s3 = inlined_call_operand.hbm [shape: f32[2,16,256], index: 3, kind: output, shape index: {}, may-alias: {0,3}]
  %s4 = sld [smem:[#allocation0]]
  $region53: #{fn.1} parent=0
    _
  %s6 = ssub.s32 1, %s4
  %s7 = scalar_select 0, %s6, %s4
  $region1: #{fn.1} parent=0
    #allocation2 [shape = 'u8[32768]{0}', space=vmem, size = 0x8000, scoped, tag = 'input window, operand 0']
    #allocation3 [shape = 's32[2]{0}', space=sflag, size = 0x8, scoped, tag = 'scoped memory for fn.1']
    #allocation4 [shape = 's32[2]{0}', space=sflag, size = 0x8, scoped, tag = 'scoped memory for fn.1']
    #allocation5 [shape = 'u8[16384]{0}', space=vmem, size = 0x4000, scoped, tag = 'input window, operand 1, single buffered']
    #allocation6 [shape = 's32[1]{0}', space=sflag, size = 0x4, scoped, tag = 'scoped memory for fn.1']
    #allocation7 [shape = 'u8[32768]{0}', space=vmem, size = 0x8000, scoped, tag = 'output window, operand 0']
    %8 = vsyncpa [#allocation3], 0
    %s9 = scalar_lea.sflag [#allocation3], 1
    %10 = vsyncpa %s9, 0
    %11 = vsyncpa [#allocation6], 0
    %12 = vsyncpa [#allocation4], 0
    %s13 = scalar_lea.sflag [#allocation4], 1
    %14 = vsyncpa %s13, 0
    loop: start=0, step=1, limit=4
    $region2: #{fn.1} parent=1 // loop_pre_header
      _
    $region3: #{fn.1} parent=1 // loop_header
      %s16 = sphi 0, %s20
      %p17 = scmp.ge.s32.totalorder %s16, 4
      %s23 = sphi 0, %s42
      %s24 = sphi 0, %s38
      %s25 = sphi 0, %s34
      %s26 = sphi 0, %s23
      %s27 = sphi 0, %s24
      %s28 = sphi 0, %s25
      %s29 = sphi 0, %s26
      %s30 = sphi 0, %s27
      %s31 = sphi 0, %s28
      %s51 = sphi 0, %s53
      %s54 = sphi 0, %s51
      %s55 = sphi 0, %s54
      %s71 = sphi 0, %s55
      %s79 = sphi 0, %s81
      %s82 = sphi 0, %s79
      %s83 = sphi 0, %s82
      %s99 = sphi 0, %s83
      %s105 = sphi 0, %s107
      %s108 = sphi 0, %s105
      %s109 = sphi 0, %s108
      %s125 = sphi 0, %s109
      %s137 = sphi 0, %s139
      %s140 = sphi 0, %s137
      %s141 = sphi 0, %s140
      %s157 = sphi 0, %s141
    $region4: #{fn.1} parent=1 // loop_header_branch
      %19 = sbr.rel (%p17) target = $region8
    $region5: #{fn.1} parent=1 // loop_body
      %s21 = ssub.s32 %s16, 1
      %s22 = ssub.s32 %s16, 2
      %s32 = sadd.s32 1, %s25
      %p33 = scmp.ge.s32.totalorder %s32, 2
      %s34 = scalar_select %p33, 0, %s32
      %s35 = sadd.s32 1, %s24
      %s36 = scalar_select %p33, %s35, %s24
      %p37 = scmp.ge.s32.totalorder %s36, 1
      %s38 = scalar_select %p37, 0, %s36
      %s39 = sadd.s32 1, %s23
      %s40 = scalar_select %p37, %s39, %s23
      %p41 = scmp.ge.s32.totalorder %s40, 1
      %s42 = scalar_select %p41, 0, %s40
      %s43 = sadd.s32 %s24, 1
      %s44 = sadd.s32 %s38, 1
      %s45 = ssub.s32 %s25, %s34
      %s46 = ssub.s32 %s23, %s42
      %s47 = sor.u32 %s45, %s46
      %s48 = ssub.s32 %s43, %s44
      %s49 = sor.u32 %s47, %s48
      %p50 = scmp.eq.s32.totalorder %s49, 0
      %s52 = sadd.s32 %s51, 1
      %s53 = scalar_select %p50, %s51, %s52
      %p56 = pneg %p50
      %p57 = scmp.eq.s32.totalorder %s16, 1
      %p58 = por %p56, %p57
      %p59 = scmp.ne.s32.totalorder %s51, %s54
      %p60 = scmp.eq.s32.totalorder %s16, 0
      %p61 = por %p59, %p60
      %p62 = scmp.ne.s32.totalorder %s51, %s54
      %p63 = scmp.eq.s32.totalorder %s21, 1
      %p64 = por %p62, %p63
      %p65 = scmp.ne.s32.totalorder %s54, %s55
      %p66 = scmp.eq.s32.totalorder %s21, 0
      %p67 = por %p65, %p66
      %p68 = scmp.ne.s32.totalorder %s54, %s55
      %p69 = scmp.eq.s32.totalorder %s22, 1
      %p70 = por %p68, %p69
      %p72 = scmp.ne.s32.totalorder %s55, %s71
      %p73 = scmp.eq.s32.totalorder %s22, 0
      %p74 = por %p72, %p73
      %s75 = ssub.s32 %s23, %s42
      %s76 = ssub.s32 %s24, %s38
      %s77 = sor.u32 %s75, %s76
      %p78 = scmp.eq.s32.totalorder %s77, 0
      %s80 = sadd.s32 %s79, 1
      %s81 = scalar_select %p78, %s79, %s80
      %p84 = pneg %p78
      %p85 = scmp.eq.s32.totalorder %s16, 1
      %p86 = por %p84, %p85
      %p87 = scmp.ne.s32.totalorder %s79, %s82
      %p88 = scmp.eq.s32.totalorder %s16, 0
      %p89 = por %p87, %p88
      %p90 = scmp.ne.s32.totalorder %s79, %s82
      %p91 = scmp.eq.s32.totalorder %s21, 1
      %p92 = por %p90, %p91
      %p93 = scmp.ne.s32.totalorder %s82, %s83
      %p94 = scmp.eq.s32.totalorder %s21, 0
      %p95 = por %p93, %p94
      %p96 = scmp.ne.s32.totalorder %s82, %s83
      %p97 = scmp.eq.s32.totalorder %s22, 1
      %p98 = por %p96, %p97
      %p100 = scmp.ne.s32.totalorder %s83, %s99
      %p101 = scmp.eq.s32.totalorder %s22, 0
      %p102 = por %p100, %p101
      %s103 = ssub.s32 %s24, %s38
      %p104 = scmp.eq.s32.totalorder %s103, 0
      %s106 = sadd.s32 %s105, 1
      %s107 = scalar_select %p104, %s105, %s106
      %p110 = pneg %p104
      %p111 = scmp.eq.s32.totalorder %s16, 1
      %p112 = por %p110, %p111
      %p113 = scmp.ne.s32.totalorder %s105, %s108
      %p114 = scmp.eq.s32.totalorder %s16, 0
      %p115 = por %p113, %p114
      %p116 = scmp.ne.s32.totalorder %s105, %s108
      %p117 = scmp.eq.s32.totalorder %s21, 1
      %p118 = por %p116, %p117
      %p119 = scmp.ne.s32.totalorder %s108, %s109
      %p120 = scmp.eq.s32.totalorder %s21, 0
      %p121 = por %p119, %p120
      %p122 = scmp.ne.s32.totalorder %s108, %s109
      %p123 = scmp.eq.s32.totalorder %s22, 1
      %p124 = por %p122, %p123
      %p126 = scmp.ne.s32.totalorder %s109, %s125
      %p127 = scmp.eq.s32.totalorder %s22, 0
      %p128 = por %p126, %p127
      %s129 = sadd.s32 %s24, 1
      %s130 = sadd.s32 %s38, 1
      %s131 = ssub.s32 %s25, %s34
      %s132 = ssub.s32 %s23, %s42
      %s133 = sor.u32 %s131, %s132
      %s134 = ssub.s32 %s129, %s130
      %s135 = sor.u32 %s133, %s134
      %p136 = scmp.eq.s32.totalorder %s135, 0
      %s138 = sadd.s32 %s137, 1
      %s139 = scalar_select %p136, %s137, %s138
      %p142 = pneg %p136
      %p143 = scmp.eq.s32.totalorder %s16, 1
      %p144 = por %p142, %p143
      %p145 = scmp.ne.s32.totalorder %s137, %s140
      %p146 = scmp.eq.s32.totalorder %s16, 0
      %p147 = por %p145, %p146
      %p148 = scmp.ne.s32.totalorder %s137, %s140
      %p149 = scmp.eq.s32.totalorder %s21, 1
      %p150 = por %p148, %p149
      %p151 = scmp.ne.s32.totalorder %s140, %s141
      %p152 = scmp.eq.s32.totalorder %s21, 0
      %p153 = por %p151, %p152
      %p154 = scmp.ne.s32.totalorder %s140, %s141
      %p155 = scmp.eq.s32.totalorder %s22, 1
      %p156 = por %p154, %p155
      %p158 = scmp.ne.s32.totalorder %s141, %s157
      %p159 = scmp.eq.s32.totalorder %s22, 0
      %p160 = por %p158, %p159
      %p161 = scmp.le.s32.totalorder 1, %s16
      %p162 = scmp.lt.s32.totalorder %s16, 3
      %p163 = pnand %p161, %p162
      %p164 = pneg %p163
      // Predicated region
      $region9: #{fn.1} parent=5 // pred_check
        _
      $region10: #{fn.1} parent=5 // pred_check_branch
        %166 = sbr.rel (%p163) target = $region12
      $region11: #{fn.1} parent=5 // pred_region
        %s167 = ssub.s32 %s16, 1
        // Predicated region
        $region13: #{fn.1} parent=11 // pred_check
          %p168 = pneg %p95
        $region14: #{fn.1} parent=11 // pred_check_branch
          %170 = sbr.rel (%p168) target = $region16
        $region15: #{fn.1} parent=11 // pred_region
          %s171 = smul.u32 4, %s26
          %s173 = ssub.s32 512, 512
          %174 = vsyncadd [#allocation6], %s173
          %s175 = sadd.s32 %s27, %s171
          %s176 = smul.addr %s175, 128
          %s177 = scalar_lea.hbm %s1, %s176
          %s178 = sshll.u32 [#allocation5], 4
          %s179 = int_to_ptr.vmem [resolvable:$true] %s178
          %184 = dma.hbm_to_vmem [thread:$0]  %s177, 512, %s179, [#allocation6], 128, 128, 8
        $region16: #{fn.1} parent=11 // pred_fallthru
          _
        // Predicated region
        $region17: #{fn.1} parent=11 // pred_check
          %p185 = pneg %p121
        $region18: #{fn.1} parent=11 // pred_check_branch
          %187 = sbr.rel (%p185) target = $region20
        $region19: #{fn.1} parent=11 // pred_region
          %p188 = scmp.lt.s32.totalorder %s27, 0
          %s189 = scalar_select %p188, %s27, 0
          %s190 = scalar_lea.vmem %s2, %s189
        $region20: #{fn.1} parent=11 // pred_fallthru
          _
      $region12: #{fn.1} parent=5 // pred_fallthru
        _
      %p191 = scmp.lt.s32.totalorder %s16, 2
      // Predicated region
      $region21: #{fn.1} parent=5 // pred_check
        %p192 = pneg %p191
      $region22: #{fn.1} parent=5 // pred_check_branch
        %194 = sbr.rel (%p192) target = $region24
      $region23: #{fn.1} parent=5 // pred_region
        // Predicated region
        $region25: #{fn.1} parent=23 // pred_check
          %p195 = pneg %p61
        $region26: #{fn.1} parent=23 // pred_check_branch
          %197 = sbr.rel (%p195) target = $region28
        $region27: #{fn.1} parent=23 // pred_region
          %s198 = sand.u32 %s51, 1
          %s199 = scalar_lea.sflag [#allocation3], %s198
          %s200 = sand.u32 %s51, 1
          %s201 = smul.addr %s200, 32
          %s202 = scalar_lea.vmem [#allocation2], %s201
          %s203 = sadd.s32 %s24, 1
          %s204 = smul.u32 4, %s23
          %s205 = ssub.s32 2, %s204
          %s206 = smul.u32 128, %s205
          %s208 = ssub.s32 512, %s206
          %209 = vsyncadd %s199, %s208
          %p210 = scmp.ne.s32.totalorder 0, %s206
          %s211 = smul.addr %s204, 2
          %s212 = sadd.s32 %s203, %s211
          %s213 = smul.addr %s25, 4
          %s214 = sadd.s32 %s212, %s213
          %s215 = smul.addr %s214, 128
          %s216 = scalar_lea.hbm %s0, %s215
          %s217 = smul.u32 8, %s205
          %s218 = sshll.u32 %s202, 4
          %s219 = int_to_ptr.vmem [resolvable:$true] %s218
          %s220 = sshll.u32 %s217, 4
          %224 = dma.hbm_to_vmem [thread:$0]  (%p210), %s216, %s220, %s219, %s199, 256, 128, 8
        $region28: #{fn.1} parent=23 // pred_fallthru
          _
      $region24: #{fn.1} parent=5 // pred_fallthru
        _
      %p225 = scmp.le.s32.totalorder 1, %s16
      %p226 = scmp.lt.s32.totalorder %s16, 3
      %p227 = pnand %p225, %p226
      %p228 = pneg %p227
      // Predicated region
      $region29: #{fn.1} parent=5 // pred_check
        _
      $region30: #{fn.1} parent=5 // pred_check_branch
        %230 = sbr.rel (%p227) target = $region32
      $region31: #{fn.1} parent=5 // pred_region
        %s231 = ssub.s32 %s16, 1
        %s232 = sand.u32 %s54, 1
        %s233 = scalar_lea.sflag [#allocation3], %s232
        %s234 = sand.u32 %s54, 1
        %s235 = smul.addr %s234, 32
        %s236 = scalar_lea.vmem [#allocation2], %s235
        // Predicated region
        $region33: #{fn.1} parent=31 // pred_check
          %p237 = pneg %p67
        $region34: #{fn.1} parent=31 // pred_check_branch
          %239 = sbr.rel (%p237) target = $region36
        $region35: #{fn.1} parent=31 // pred_region
          %240 = dma.done %s233, 512
        $region36: #{fn.1} parent=31 // pred_fallthru
          _
        // Predicated region
        $region37: #{fn.1} parent=31 // pred_check
          %p241 = pneg %p95
        $region38: #{fn.1} parent=31 // pred_check_branch
          %243 = sbr.rel (%p241) target = $region40
        $region39: #{fn.1} parent=31 // pred_region
          %244 = dma.done [#allocation6], 512
        $region40: #{fn.1} parent=31 // pred_fallthru
          _
        %s245 = sand.u32 %s54, 1
        %s246 = scalar_lea.sflag [#allocation3], %s245
        %s247 = sand.u32 %s54, 1
        %s248 = smul.addr %s247, 32
        %s249 = scalar_lea.vmem [#allocation2], %s248
        %p250 = pneg %p67
        %p251 = pneg %p64
        %p252 = pneg %p95
        %p253 = pneg %p92
        %p254 = scmp.lt.s32.totalorder %s27, 0
        %s255 = scalar_select %p254, %s27, 0
        %s256 = scalar_lea.vmem %s2, %s255
        %p257 = pneg %p121
        %p258 = pneg %p118
        %p259 = pneg %p153
        %p260 = pneg %p150
        %s261 = sand.u32 %s140, 1
        %s262 = scalar_lea.sflag [#allocation4], %s261
        %s263 = sand.u32 %s140, 1
        %s264 = smul.addr %s263, 32
        %s265 = scalar_lea.vmem [#allocation7], %s264
        %s266 = sadd.s32 %s27, 1
        %s267 = smul.u32 4, %s26
        %s268 = ssub.s32 2, %s267
        %s269 = smul.u32 128, %s268
        %s270 = smul.u32 4, %s26
        %p271 = scmp.lt.s32.totalorder %s27, 0
        %s272 = scalar_select %p271, %s27, 0
        %s273 = scalar_lea.vmem %s2, %s272
        %s274 = sadd.s32 %s27, 1
        %s275 = smul.u32 4, %s26
        %s276 = ssub.s32 2, %s275
        %s277 = smul.u32 128, %s276
        %v278 = vld [vmem:[#allocation5] sm:$0xff]
        %v279 = vld [vmem:[#allocation5 + $0x8] sm:$0xff]
        %v280 = vld [vmem:[#allocation5 + $0x10] sm:$0xff]
        %v281 = vld [vmem:[#allocation5 + $0x18] sm:$0xff]
        %v282 = vld [vmem:[%s273] sm:$0x1]
        %v284 = vlaneseq
        %v285 = vshrl.u32 %v284, 7
        %v286 = vsub.s32 0, %v285
        %v287 = vrot.slane %v282, %v286
        %v289 = vmul.f32 %v278, %v287
        %v290 = vmul.f32 %v279, %v287
        %v291 = vmul.f32 %v280, %v287
        %v292 = vmul.f32 %v281, %v287
        %v293 = vld [vmem:[%s236] sm:$0xff]
        %v294 = vld [vmem:[%s236 + $0x8] sm:$0xff]
        %v295 = vld [vmem:[%s236 + $0x10] sm:$0xff]
        %v296 = vld [vmem:[%s236 + $0x18] sm:$0xff]
        %v297 = vadd.f32 %v293, %v289
        %v298 = vadd.f32 %v294, %v290
        %v299 = vadd.f32 %v295, %v291
        %v300 = vadd.f32 %v296, %v292
        %301 = vst [vmem:[%s265] sm:$0xff] %v297
        %302 = vst [vmem:[%s265 + $0x8] sm:$0xff] %v298
        %303 = vst [vmem:[%s265 + $0x10] sm:$0xff] %v299
        %304 = vst [vmem:[%s265 + $0x18] sm:$0xff] %v300
        %s305 = sand.u32 %s140, 1
        %s306 = scalar_lea.sflag [#allocation4], %s305
        %s307 = sand.u32 %s140, 1
        %s308 = smul.addr %s307, 32
        %s309 = scalar_lea.vmem [#allocation7], %s308
        // Predicated region
        $region41: #{fn.1} parent=31 // pred_check
          %p310 = pneg %p150
        $region42: #{fn.1} parent=31 // pred_check_branch
          %312 = sbr.rel (%p310) target = $region44
        $region43: #{fn.1} parent=31 // pred_region
          %s313 = sadd.s32 %s27, 1
          %s314 = smul.u32 4, %s26
          %s315 = ssub.s32 2, %s314
          %s316 = smul.u32 128, %s315
          %s318 = ssub.s32 512, %s316
          %319 = vsyncadd %s306, %s318
          %p320 = scmp.ne.s32.totalorder 0, %s316
          %s321 = smul.addr %s314, 2
          %s322 = sadd.s32 %s313, %s321
          %s323 = smul.addr %s28, 4
          %s324 = sadd.s32 %s322, %s323
          %s325 = smul.addr %s324, 128
          %s326 = scalar_lea.hbm %s3, %s325
          %s327 = smul.u32 8, %s315
          %s328 = sshll.u32 %s309, 4
          %s329 = int_to_ptr.vmem [resolvable:$true] %s328
          %s330 = sshll.u32 %s327, 4
          %334 = dma.vmem_to_hbm [thread:$0]  (%p320), %s329, %s330, %s326, %s306, 128, 256, 8
        $region44: #{fn.1} parent=31 // pred_fallthru
          _
      $region32: #{fn.1} parent=5 // pred_fallthru
        _
      %p335 = scmp.le.s32.totalorder 2, %s16
      // Predicated region
      $region45: #{fn.1} parent=5 // pred_check
        %p336 = pneg %p335
      $region46: #{fn.1} parent=5 // pred_check_branch
        %338 = sbr.rel (%p336) target = $region48
      $region47: #{fn.1} parent=5 // pred_region
        %s339 = ssub.s32 %s16, 2
        // Predicated region
        $region49: #{fn.1} parent=47 // pred_check
          %p340 = pneg %p156
        $region50: #{fn.1} parent=47 // pred_check_branch
          %342 = sbr.rel (%p340) target = $region52
        $region51: #{fn.1} parent=47 // pred_region
          %s343 = sand.u32 %s141, 1
          %s344 = scalar_lea.sflag [#allocation4], %s343
          %s345 = sand.u32 %s141, 1
          %s346 = smul.addr %s345, 32
          %s347 = scalar_lea.vmem [#allocation7], %s346
          %348 = dma.done %s344, 512
        $region52: #{fn.1} parent=47 // pred_fallthru
          _
      $region48: #{fn.1} parent=5 // pred_fallthru
        _
    $region6: #{fn.1} parent=1 // loop_footer
      %s20 = sadd.s32 1, %s16
    $region7: #{fn.1} parent=1 // loop_footer_branch
      %15 = sbr.rel target = $region3
    $region8: #{fn.1} parent=1 // loop_exit
      _
    %349 = vsyncpa [#allocation3], 1
    %s350 = scalar_lea.sflag [#allocation3], 1
    %351 = vsyncpa %s350, 1
    %352 = vsyncpa [#allocation6], 1
    %353 = vsyncpa [#allocation4], 1
    %s354 = scalar_lea.sflag [#allocation4], 1
    %355 = vsyncpa %s354, 1

</llo_original>
